<compile_context>
chip_gen: v7x
topology: tpu7x:2x2x1
jax: 0.10.0
libtpu: 0.0.40
codegen_flags: <defaults>
</compile_context>

<pallas_src>
import functools

import numpy as np
import jax
import jax.numpy as jnp
from jax.experimental import pallas as pl
from jax.experimental.pallas import tpu as pltpu


def _spatial_attention_kernel(x_ref, mask_ref, cw_ref, cb_ref, o_ref,
                              *, C, H, W, k, p):
    HW = H * W
    xb = x_ref[0]                                          # (C, HW) lane-dense

    # ---- channel pooling: one vectorized reduce each ----
    sp_max = jnp.max(xb, axis=0, keepdims=True)            # (1, HW)
    sp_avg = jnp.sum(xb, axis=0, keepdims=True) * (1.0 / C)

    masks = mask_ref[...]                                  # (k*k, HW) border masks

    # ---- k x k "same" conv over the 2-channel [max, avg] stack ----
    # Each tap is a static lane rotation of the flat map (offset di*W + dj)
    # multiplied by its SMEM scalar weight; the precomputed mask zeroes the
    # positions whose 2-D neighbour would fall outside the image.
    conv = jnp.zeros((1, HW), jnp.float32)
    for ki in range(k):
        for kj in range(k):
            tap = ki * k + kj
            delta = (ki - p) * W + (kj - p)                # flat neighbour offset
            shift = (-delta) % HW                          # roll so out[i] = in[i+delta]
            w_max = cw_ref[tap]                            # in-ch 0 = channel max
            w_avg = cw_ref[k * k + tap]                    # in-ch 1 = channel avg
            if shift == 0:
                sh_max, sh_avg = sp_max, sp_avg
            else:
                sh_max = pltpu.roll(sp_max, shift, axis=1)
                sh_avg = pltpu.roll(sp_avg, shift, axis=1)
            conv = conv + masks[tap:tap + 1] * (sh_max * w_max + sh_avg * w_avg)

    att = jax.nn.sigmoid(conv + cb_ref[0])                 # (1, HW), one sigmoid
    o_ref[0] = jnp.broadcast_to(att, (C, HW))              # repeat over channels


def spatial_attention_forward(x, conv_w, conv_b):
    """x: (B, C, H, W) f32; conv_w: (1, 2, k, k); conv_b: (1,). Returns (B, C, H, W)."""
    x = x.astype(jnp.float32)
    B, C, H, W = x.shape
    k = conv_w.shape[-1]
    p = (k - 1) // 2
    HW = H * W

    # Lane-dense views (last dim H*W, a multiple of 128 for these shapes).
    x_flat = x.reshape(B, C, HW)
    cw_flat = conv_w.reshape(2 * k * k).astype(jnp.float32)
    cb = conv_b.reshape(1).astype(jnp.float32)

    # Precompute per-tap border-validity masks on the host (avoids in-kernel
    # integer div/mod); a tiny (k*k, HW) f32 tile, constant across the grid.
    rows = np.arange(H).reshape(H, 1)
    cols = np.arange(W).reshape(1, W)
    mask_list = []
    for ki in range(k):
        for kj in range(k):
            di, dj = ki - p, kj - p
            valid = ((rows + di >= 0) & (rows + di < H) &
                     (cols + dj >= 0) & (cols + dj < W))
            mask_list.append(valid.reshape(HW))
    mask_arr = jnp.asarray(np.stack(mask_list).astype(np.float32))   # (k*k, HW)

    kernel = functools.partial(_spatial_attention_kernel,
                               C=C, H=H, W=W, k=k, p=p)

    block_bytes = C * HW * 4
    vmem_limit = int(min(64 * 1024 * 1024,
                         max(32 * 1024 * 1024, 8 * block_bytes)))

    out_flat = pl.pallas_call(
        kernel,
        out_shape=jax.ShapeDtypeStruct((B, C, HW), jnp.float32),
        grid=(B,),
        in_specs=[
            pl.BlockSpec((1, C, HW), lambda b: (b, 0, 0)),      # x (lane dense)
            pl.BlockSpec((k * k, HW), lambda b: (0, 0)),        # border masks
            pl.BlockSpec(memory_space=pltpu.MemorySpace.SMEM),  # conv taps (2*k*k,)
            pl.BlockSpec(memory_space=pltpu.MemorySpace.SMEM),  # conv bias (1,)
        ],
        out_specs=pl.BlockSpec((1, C, HW), lambda b: (b, 0, 0)),
        compiler_params=pltpu.CompilerParams(
            dimension_semantics=("parallel",),   # batch images are independent
            vmem_limit_bytes=vmem_limit,
        ),
        cost_estimate=pl.CostEstimate(
            flops=B * HW * (2 * C + 5 * k * k + 4),
            transcendentals=B * HW,
            bytes_accessed=2 * B * C * HW * 4 + k * k * HW * 4,
        ),
    )(x_flat, mask_arr, cw_flat, cb)

    return out_flat.reshape(B, C, H, W)


def spatial_attention_reference(x, conv_w, conv_b):
    """Pure-JAX mirror of the PyTorch SpatialAttention.forward (NCHW)."""
    mx = jnp.max(x, axis=1, keepdims=True)
    avg = jnp.mean(x, axis=1, keepdims=True)
    pool = jnp.concatenate([mx, avg], axis=1)                     # (B, 2, H, W)
    k = conv_w.shape[-1]
    p = (k - 1) // 2
    conv = jax.lax.conv_general_dilated(
        pool, conv_w, window_strides=(1, 1), padding=[(p, p), (p, p)],
        dimension_numbers=("NCHW", "OIHW", "NCHW")) + conv_b[None, :, None, None]
    att = jax.nn.sigmoid(conv)                                    # (B, 1, H, W)
    return jnp.broadcast_to(att, x.shape)                         # repeat over C


if __name__ == "__main__":
    B, C, H, W = 2, 4, 16, 16
    kernel_size = 3

    key = jax.random.PRNGKey(0)
    kx, kw, kb = jax.random.split(key, 3)
    x = jax.random.normal(kx, (B, C, H, W), jnp.float32)
    conv_w = jax.random.normal(kw, (1, 2, kernel_size, kernel_size), jnp.float32) * 0.3
    conv_b = jax.random.normal(kb, (1,), jnp.float32) * 0.1

    out = spatial_attention_forward(x, conv_w, conv_b)
    out = jax.block_until_ready(out)

    ref = spatial_attention_reference(x, conv_w, conv_b)
    assert out.shape == (B, C, H, W)
    np.testing.assert_allclose(np.asarray(out), np.asarray(ref), rtol=1e-5, atol=1e-5)
    print("KERNEL_OK")
</pallas_src>

<mosaic_0001>
module attributes {stable_mosaic.version = 11 : i64} {
  func.func @_spatial_attention_kernel(%arg0: i32, %arg1: memref<1x4x256xf32, #tpu.memory_space<vmem>>, %arg2: memref<9x256xf32, #tpu.memory_space<vmem>>, %arg3: memref<18xf32, #tpu.memory_space<smem>>, %arg4: memref<1xf32, #tpu.memory_space<smem>>, %arg5: memref<1x4x256xf32, #tpu.memory_space<vmem>>) attributes {dimension_semantics = [#tpu.dimension_semantics<parallel>], iteration_bounds = array<i64: 2>, scalar_prefetch = 0 : i64, scratch_operands = 0 : i64, tpu.core_type = #tpu.core_type<tc>, window_params = [{transform_indices = @transform_0, window_bounds = array<i64: 1, 4, 256>}, {pipeline_mode = #tpu.pipeline_mode<synchronous>, transform_indices = @transform_1, window_bounds = array<i64: 9, 256>}, {transform_indices = @transform_2, window_bounds = array<i64: 18>}, {transform_indices = @transform_3, window_bounds = array<i64: 1>}, {transform_indices = @transform_4, window_bounds = array<i64: 1, 4, 256>}]} {
    %c0 = arith.constant 0 : index
    %c0_0 = arith.constant 0 : index
    %c0_1 = arith.constant 0 : index
    %0 = vector.load %arg1[%c0, %c0_0, %c0_1] : memref<1x4x256xf32, #tpu.memory_space<vmem>>, vector<1x4x256xf32>
    %1 = vector.shape_cast %0 : vector<1x4x256xf32> to vector<4x256xf32>
    %cst = arith.constant dense<0xFF800000> : vector<256xf32>
    %2 = vector.multi_reduction <maximumf>, %1, %cst [0] : vector<4x256xf32> to vector<256xf32>
    %3 = vector.shape_cast %2 : vector<256xf32> to vector<1x256xf32>
    %cst_2 = arith.constant dense<0.000000e+00> : vector<256xf32>
    %4 = vector.multi_reduction <add>, %1, %cst_2 [0] : vector<4x256xf32> to vector<256xf32>
    %5 = vector.shape_cast %4 : vector<256xf32> to vector<1x256xf32>
    %cst_3 = arith.constant 2.500000e-01 : f32
    %6 = vector.broadcast %cst_3 : f32 to vector<1x256xf32>
    %7 = arith.mulf %5, %6 : vector<1x256xf32>
    %c0_4 = arith.constant 0 : index
    %c0_5 = arith.constant 0 : index
    %8 = vector.load %arg2[%c0_4, %c0_5] : memref<9x256xf32, #tpu.memory_space<vmem>>, vector<9x256xf32>
    %cst_6 = arith.constant 0.000000e+00 : f32
    %9 = vector.broadcast %cst_6 : f32 to vector<1x256xf32>
    %c0_7 = arith.constant 0 : index
    %10 = memref.load %arg3[%c0_7] : memref<18xf32, #tpu.memory_space<smem>>
    %c9 = arith.constant 9 : index
    %11 = memref.load %arg3[%c9] : memref<18xf32, #tpu.memory_space<smem>>
    %c17_i32 = arith.constant 17 : i32
    %12 = tpu.dynamic_rotate %3 by %c17_i32 dim 1 : vector<1x256xf32>, i32 -> vector<1x256xf32>
    %c17_i32_8 = arith.constant 17 : i32
    %13 = tpu.dynamic_rotate %7 by %c17_i32_8 dim 1 : vector<1x256xf32>, i32 -> vector<1x256xf32>
    %14 = vector.extract_strided_slice %8 {offsets = [0, 0], sizes = [1, 256], strides = [1, 1]} : vector<9x256xf32> to vector<1x256xf32>
    %15 = vector.broadcast %10 : f32 to vector<1x256xf32>
    %16 = arith.mulf %12, %15 : vector<1x256xf32>
    %17 = vector.broadcast %11 : f32 to vector<1x256xf32>
    %18 = arith.mulf %13, %17 : vector<1x256xf32>
    %19 = arith.addf %16, %18 : vector<1x256xf32>
    %20 = arith.mulf %14, %19 : vector<1x256xf32>
    %21 = arith.addf %9, %20 : vector<1x256xf32>
    %c1 = arith.constant 1 : index
    %22 = memref.load %arg3[%c1] : memref<18xf32, #tpu.memory_space<smem>>
    %c10 = arith.constant 10 : index
    %23 = memref.load %arg3[%c10] : memref<18xf32, #tpu.memory_space<smem>>
    %c16_i32 = arith.constant 16 : i32
    %24 = tpu.dynamic_rotate %3 by %c16_i32 dim 1 : vector<1x256xf32>, i32 -> vector<1x256xf32>
    %c16_i32_9 = arith.constant 16 : i32
    %25 = tpu.dynamic_rotate %7 by %c16_i32_9 dim 1 : vector<1x256xf32>, i32 -> vector<1x256xf32>
    %26 = vector.extract_strided_slice %8 {offsets = [1, 0], sizes = [1, 256], strides = [1, 1]} : vector<9x256xf32> to vector<1x256xf32>
    %27 = vector.broadcast %22 : f32 to vector<1x256xf32>
    %28 = arith.mulf %24, %27 : vector<1x256xf32>
    %29 = vector.broadcast %23 : f32 to vector<1x256xf32>
    %30 = arith.mulf %25, %29 : vector<1x256xf32>
    %31 = arith.addf %28, %30 : vector<1x256xf32>
    %32 = arith.mulf %26, %31 : vector<1x256xf32>
    %33 = arith.addf %21, %32 : vector<1x256xf32>
    %c2 = arith.constant 2 : index
    %34 = memref.load %arg3[%c2] : memref<18xf32, #tpu.memory_space<smem>>
    %c11 = arith.constant 11 : index
    %35 = memref.load %arg3[%c11] : memref<18xf32, #tpu.memory_space<smem>>
    %c15_i32 = arith.constant 15 : i32
    %36 = tpu.dynamic_rotate %3 by %c15_i32 dim 1 : vector<1x256xf32>, i32 -> vector<1x256xf32>
    %c15_i32_10 = arith.constant 15 : i32
    %37 = tpu.dynamic_rotate %7 by %c15_i32_10 dim 1 : vector<1x256xf32>, i32 -> vector<1x256xf32>
    %38 = vector.extract_strided_slice %8 {offsets = [2, 0], sizes = [1, 256], strides = [1, 1]} : vector<9x256xf32> to vector<1x256xf32>
    %39 = vector.broadcast %34 : f32 to vector<1x256xf32>
    %40 = arith.mulf %36, %39 : vector<1x256xf32>
    %41 = vector.broadcast %35 : f32 to vector<1x256xf32>
    %42 = arith.mulf %37, %41 : vector<1x256xf32>
    %43 = arith.addf %40, %42 : vector<1x256xf32>
    %44 = arith.mulf %38, %43 : vector<1x256xf32>
    %45 = arith.addf %33, %44 : vector<1x256xf32>
    %c3 = arith.constant 3 : index
    %46 = memref.load %arg3[%c3] : memref<18xf32, #tpu.memory_space<smem>>
    %c12 = arith.constant 12 : index
    %47 = memref.load %arg3[%c12] : memref<18xf32, #tpu.memory_space<smem>>
    %c1_i32 = arith.constant 1 : i32
    %48 = tpu.dynamic_rotate %3 by %c1_i32 dim 1 : vector<1x256xf32>, i32 -> vector<1x256xf32>
    %c1_i32_11 = arith.constant 1 : i32
    %49 = tpu.dynamic_rotate %7 by %c1_i32_11 dim 1 : vector<1x256xf32>, i32 -> vector<1x256xf32>
    %50 = vector.extract_strided_slice %8 {offsets = [3, 0], sizes = [1, 256], strides = [1, 1]} : vector<9x256xf32> to vector<1x256xf32>
    %51 = vector.broadcast %46 : f32 to vector<1x256xf32>
    %52 = arith.mulf %48, %51 : vector<1x256xf32>
    %53 = vector.broadcast %47 : f32 to vector<1x256xf32>
    %54 = arith.mulf %49, %53 : vector<1x256xf32>
    %55 = arith.addf %52, %54 : vector<1x256xf32>
    %56 = arith.mulf %50, %55 : vector<1x256xf32>
    %57 = arith.addf %45, %56 : vector<1x256xf32>
    %c4 = arith.constant 4 : index
    %58 = memref.load %arg3[%c4] : memref<18xf32, #tpu.memory_space<smem>>
    %c13 = arith.constant 13 : index
    %59 = memref.load %arg3[%c13] : memref<18xf32, #tpu.memory_space<smem>>
    %60 = vector.extract_strided_slice %8 {offsets = [4, 0], sizes = [1, 256], strides = [1, 1]} : vector<9x256xf32> to vector<1x256xf32>
    %61 = vector.broadcast %58 : f32 to vector<1x256xf32>
    %62 = arith.mulf %3, %61 : vector<1x256xf32>
    %63 = vector.broadcast %59 : f32 to vector<1x256xf32>
    %64 = arith.mulf %7, %63 : vector<1x256xf32>
    %65 = arith.addf %62, %64 : vector<1x256xf32>
    %66 = arith.mulf %60, %65 : vector<1x256xf32>
    %67 = arith.addf %57, %66 : vector<1x256xf32>
    %c5 = arith.constant 5 : index
    %68 = memref.load %arg3[%c5] : memref<18xf32, #tpu.memory_space<smem>>
    %c14 = arith.constant 14 : index
    %69 = memref.load %arg3[%c14] : memref<18xf32, #tpu.memory_space<smem>>
    %c255_i32 = arith.constant 255 : i32
    %70 = tpu.dynamic_rotate %3 by %c255_i32 dim 1 : vector<1x256xf32>, i32 -> vector<1x256xf32>
    %c255_i32_12 = arith.constant 255 : i32
    %71 = tpu.dynamic_rotate %7 by %c255_i32_12 dim 1 : vector<1x256xf32>, i32 -> vector<1x256xf32>
    %72 = vector.extract_strided_slice %8 {offsets = [5, 0], sizes = [1, 256], strides = [1, 1]} : vector<9x256xf32> to vector<1x256xf32>
    %73 = vector.broadcast %68 : f32 to vector<1x256xf32>
    %74 = arith.mulf %70, %73 : vector<1x256xf32>
    %75 = vector.broadcast %69 : f32 to vector<1x256xf32>
    %76 = arith.mulf %71, %75 : vector<1x256xf32>
    %77 = arith.addf %74, %76 : vector<1x256xf32>
    %78 = arith.mulf %72, %77 : vector<1x256xf32>
    %79 = arith.addf %67, %78 : vector<1x256xf32>
    %c6 = arith.constant 6 : index
    %80 = memref.load %arg3[%c6] : memref<18xf32, #tpu.memory_space<smem>>
    %c15 = arith.constant 15 : index
    %81 = memref.load %arg3[%c15] : memref<18xf32, #tpu.memory_space<smem>>
    %c241_i32 = arith.constant 241 : i32
    %82 = tpu.dynamic_rotate %3 by %c241_i32 dim 1 : vector<1x256xf32>, i32 -> vector<1x256xf32>
    %c241_i32_13 = arith.constant 241 : i32
    %83 = tpu.dynamic_rotate %7 by %c241_i32_13 dim 1 : vector<1x256xf32>, i32 -> vector<1x256xf32>
    %84 = vector.extract_strided_slice %8 {offsets = [6, 0], sizes = [1, 256], strides = [1, 1]} : vector<9x256xf32> to vector<1x256xf32>
    %85 = vector.broadcast %80 : f32 to vector<1x256xf32>
    %86 = arith.mulf %82, %85 : vector<1x256xf32>
    %87 = vector.broadcast %81 : f32 to vector<1x256xf32>
    %88 = arith.mulf %83, %87 : vector<1x256xf32>
    %89 = arith.addf %86, %88 : vector<1x256xf32>
    %90 = arith.mulf %84, %89 : vector<1x256xf32>
    %91 = arith.addf %79, %90 : vector<1x256xf32>
    %c7 = arith.constant 7 : index
    %92 = memref.load %arg3[%c7] : memref<18xf32, #tpu.memory_space<smem>>
    %c16 = arith.constant 16 : index
    %93 = memref.load %arg3[%c16] : memref<18xf32, #tpu.memory_space<smem>>
    %c240_i32 = arith.constant 240 : i32
    %94 = tpu.dynamic_rotate %3 by %c240_i32 dim 1 : vector<1x256xf32>, i32 -> vector<1x256xf32>
    %c240_i32_14 = arith.constant 240 : i32
    %95 = tpu.dynamic_rotate %7 by %c240_i32_14 dim 1 : vector<1x256xf32>, i32 -> vector<1x256xf32>
    %96 = vector.extract_strided_slice %8 {offsets = [7, 0], sizes = [1, 256], strides = [1, 1]} : vector<9x256xf32> to vector<1x256xf32>
    %97 = vector.broadcast %92 : f32 to vector<1x256xf32>
    %98 = arith.mulf %94, %97 : vector<1x256xf32>
    %99 = vector.broadcast %93 : f32 to vector<1x256xf32>
    %100 = arith.mulf %95, %99 : vector<1x256xf32>
    %101 = arith.addf %98, %100 : vector<1x256xf32>
    %102 = arith.mulf %96, %101 : vector<1x256xf32>
    %103 = arith.addf %91, %102 : vector<1x256xf32>
    %c8 = arith.constant 8 : index
    %104 = memref.load %arg3[%c8] : memref<18xf32, #tpu.memory_space<smem>>
    %c17 = arith.constant 17 : index
    %105 = memref.load %arg3[%c17] : memref<18xf32, #tpu.memory_space<smem>>
    %c239_i32 = arith.constant 239 : i32
    %106 = tpu.dynamic_rotate %3 by %c239_i32 dim 1 : vector<1x256xf32>, i32 -> vector<1x256xf32>
    %c239_i32_15 = arith.constant 239 : i32
    %107 = tpu.dynamic_rotate %7 by %c239_i32_15 dim 1 : vector<1x256xf32>, i32 -> vector<1x256xf32>
    %108 = vector.extract_strided_slice %8 {offsets = [8, 0], sizes = [1, 256], strides = [1, 1]} : vector<9x256xf32> to vector<1x256xf32>
    %109 = vector.broadcast %104 : f32 to vector<1x256xf32>
    %110 = arith.mulf %106, %109 : vector<1x256xf32>
    %111 = vector.broadcast %105 : f32 to vector<1x256xf32>
    %112 = arith.mulf %107, %111 : vector<1x256xf32>
    %113 = arith.addf %110, %112 : vector<1x256xf32>
    %114 = arith.mulf %108, %113 : vector<1x256xf32>
    %115 = arith.addf %103, %114 : vector<1x256xf32>
    %c0_16 = arith.constant 0 : index
    %116 = memref.load %arg4[%c0_16] : memref<1xf32, #tpu.memory_space<smem>>
    %117 = vector.broadcast %116 : f32 to vector<1x256xf32>
    %118 = arith.addf %115, %117 : vector<1x256xf32>
    %119 = arith.negf %118 : vector<1x256xf32>
    %120 = math.exp %119 : vector<1x256xf32>
    %cst_17 = arith.constant 1.000000e+00 : f32
    %121 = vector.broadcast %cst_17 : f32 to vector<1x256xf32>
    %122 = arith.addf %121, %120 : vector<1x256xf32>
    %123 = arith.divf %121, %122 : vector<1x256xf32>
    %124 = vector.shape_cast %123 : vector<1x256xf32> to vector<1x256xf32>
    %125 = vector.broadcast %124 : vector<1x256xf32> to vector<4x256xf32>
    %c0_18 = arith.constant 0 : index
    %c0_19 = arith.constant 0 : index
    %c0_20 = arith.constant 0 : index
    %126 = vector.load %arg5[%c0_18, %c0_19, %c0_20] : memref<1x4x256xf32, #tpu.memory_space<vmem>>, vector<1x4x256xf32>
    %127 = vector.shape_cast %126 : vector<1x4x256xf32> to vector<4x256xf32>
    %128 = vector.shape_cast %125 : vector<4x256xf32> to vector<1x4x256xf32>
    tpu.vector_store %arg5[%c0_18, %c0_19, %c0_20], %128 {strides = array<i32>} : memref<1x4x256xf32, #tpu.memory_space<vmem>>, vector<1x4x256xf32>,
    return
  }
  func.func @transform_0(%arg0: i32) -> (i32, i32, i32) {
    %c0_i32 = arith.constant 0 : i32
    %c0_i32_0 = arith.constant 0 : i32
    %c0_i32_1 = arith.constant 0 : i32
    return %arg0, %c0_i32, %c0_i32_0 : i32, i32, i32
  }
  func.func @transform_1(%arg0: i32) -> (i32, i32) {
    %c0_i32 = arith.constant 0 : i32
    %c0_i32_0 = arith.constant 0 : i32
    %c0_i32_1 = arith.constant 0 : i32
    return %c0_i32, %c0_i32_0 : i32, i32
  }
  func.func @transform_2(%arg0: i32) -> i32 {
    %c0_i32 = arith.constant 0 : i32
    %c0_i32_0 = arith.constant 0 : i32
    return %c0_i32 : i32
  }
  func.func @transform_3(%arg0: i32) -> i32 {
    %c0_i32 = arith.constant 0 : i32
    %c0_i32_0 = arith.constant 0 : i32
    return %c0_i32 : i32
  }
  func.func @transform_4(%arg0: i32) -> (i32, i32, i32) {
    %c0_i32 = arith.constant 0 : i32
    %c0_i32_0 = arith.constant 0 : i32
    %c0_i32_1 = arith.constant 0 : i32
    return %arg0, %c0_i32, %c0_i32_0 : i32, i32, i32
  }
}

</mosaic_0001>

<llo_original>
// kernel: tpu_custom_call.1
$region0: #{tpu_custom_call.1}
  #allocation0 [shape = 'u32[]', space=smem, size = 0x4, offset = 0x4, fixed_abs, tag = 'smem constant byte address 0x4 - core index']
  #allocation1 [shape = 'u32[144,128]{1,0:T(1,128)}', space=vmem, size = 0x12000, scoped, tag = 'internal scratch']
  #allocation2 [shape = 'f32[1]{0:T(128)S(6)}', space=smem, size = 0x200, scoped, tag = 'scoped memory for tpu_custom_call.1']
  %s0 = inlined_call_operand.hbm [shape: f32[2,4,256], index: 0, kind: input, shape index: {}]
  %s1 = inlined_call_operand.hbm [shape: f32[9,256], index: 1, kind: input, shape index: {}]
  %s2 = inlined_call_operand.vmem [shape: f32[18], index: 2, kind: input, shape index: {}]
  %s3 = inlined_call_operand.<no memory space> [shape: f32[1], index: 3, kind: input, shape index: {}]
  %s4 = inlined_call_operand.hbm [shape: f32[2,4,256], index: 4, kind: output, shape index: {}]
  %s5 = sld [smem:[#allocation0]]
  $region61: #{tpu_custom_call.1} parent=0
    _
  %s7 = ssub.s32 1, %s5
  %s8 = scalar_select 0, %s7, %s5
  %9 = sst [smem:[#allocation2]] %s3
  $region1: #{tpu_custom_call.1} parent=0
    #allocation3 [shape = 'u8[8192]{0}', space=vmem, size = 0x2000, scoped, tag = 'input window, operand 0']
    #allocation4 [shape = 's32[2]{0}', space=sflag, size = 0x8, scoped, tag = 'scoped memory for tpu_custom_call.1']
    #allocation5 [shape = 's32[2]{0}', space=sflag, size = 0x8, scoped, tag = 'scoped memory for tpu_custom_call.1']
    #allocation6 [shape = 's32[2]{0}', space=sflag, size = 0x8, scoped, tag = 'scoped memory for tpu_custom_call.1']
    #allocation7 [shape = 'u8[16384]{0}', space=vmem, size = 0x4000, scoped, tag = 'input window, operand 1, single buffered']
    #allocation8 [shape = 's32[1]{0}', space=sflag, size = 0x4, scoped, tag = 'scoped memory for tpu_custom_call.1']
    #allocation9 [shape = 'u8[512]{0}', space=smem, size = 0x200, scoped, tag = 'input window, operand 2, single buffered']
    #allocation10 [shape = 'u8[8192]{0}', space=vmem, size = 0x2000, scoped, tag = 'output window, operand 0']
    %10 = vsyncpa [#allocation4], 0
    %s11 = scalar_lea.sflag [#allocation4], 1
    %12 = vsyncpa %s11, 0
    %13 = vsyncpa [#allocation8], 0
    %14 = vsyncpa [#allocation6], 0
    %15 = vsyncpa [#allocation5], 0
    %s16 = scalar_lea.sflag [#allocation5], 1
    %17 = vsyncpa %s16, 0
    loop: start=0, step=1, limit=4
    $region2: #{tpu_custom_call.1} parent=1 // loop_pre_header
      _
    $region3: #{tpu_custom_call.1} parent=1 // loop_header
      %s19 = sphi 0, %s23
      %p20 = scmp.ge.s32.totalorder %s19, 4
      %s29 = sphi 0, %s31
      %s32 = sphi 0, %s29
      %s33 = sphi 0, %s32
      %s49 = sphi 0, %s33
      %s53 = sphi 0, %s53
      %s55 = sphi 0, %s53
      %s56 = sphi 0, %s55
      %s70 = sphi 0, %s56
      %s74 = sphi 0, %s74
      %s76 = sphi 0, %s74
      %s77 = sphi 0, %s76
      %s91 = sphi 0, %s77
      %s95 = sphi 0, %s95
      %s97 = sphi 0, %s95
      %s98 = sphi 0, %s97
      %s112 = sphi 0, %s98
      %s118 = sphi 0, %s120
      %s121 = sphi 0, %s118
      %s122 = sphi 0, %s121
      %s138 = sphi 0, %s122
    $region4: #{tpu_custom_call.1} parent=1 // loop_header_branch
      %22 = sbr.rel (%p20) target = $region8
    $region5: #{tpu_custom_call.1} parent=1 // loop_body
      %s24 = ssub.s32 %s19, 1
      %s25 = ssub.s32 %s19, 2
      %s26 = sadd.s32 %s19, 1
      %s27 = ssub.s32 %s19, %s26
      %p28 = scmp.eq.s32.totalorder %s27, 0
      %s30 = sadd.s32 %s29, 1
      %s31 = scalar_select %p28, %s29, %s30
      %p34 = pneg %p28
      %p35 = scmp.eq.s32.totalorder %s19, 1
      %p36 = por %p34, %p35
      %p37 = scmp.ne.s32.totalorder %s29, %s32
      %p38 = scmp.eq.s32.totalorder %s19, 0
      %p39 = por %p37, %p38
      %p40 = scmp.ne.s32.totalorder %s29, %s32
      %p41 = scmp.eq.s32.totalorder %s24, 1
      %p42 = por %p40, %p41
      %p43 = scmp.ne.s32.totalorder %s32, %s33
      %p44 = scmp.eq.s32.totalorder %s24, 0
      %p45 = por %p43, %p44
      %p46 = scmp.ne.s32.totalorder %s32, %s33
      %p47 = scmp.eq.s32.totalorder %s25, 1
      %p48 = por %p46, %p47
      %p50 = scmp.ne.s32.totalorder %s33, %s49
      %p51 = scmp.eq.s32.totalorder %s25, 0
      %p52 = por %p50, %p51
      %s54 = sadd.s32 %s53, 1
      %p57 = scmp.eq.s32.totalorder %s19, 1
      %p58 = scmp.ne.s32.totalorder %s53, %s55
      %p59 = scmp.eq.s32.totalorder %s19, 0
      %p60 = por %p58, %p59
      %p61 = scmp.ne.s32.totalorder %s53, %s55
      %p62 = scmp.eq.s32.totalorder %s24, 1
      %p63 = por %p61, %p62
      %p64 = scmp.ne.s32.totalorder %s55, %s56
      %p65 = scmp.eq.s32.totalorder %s24, 0
      %p66 = por %p64, %p65
      %p67 = scmp.ne.s32.totalorder %s55, %s56
      %p68 = scmp.eq.s32.totalorder %s25, 1
      %p69 = por %p67, %p68
      %p71 = scmp.ne.s32.totalorder %s56, %s70
      %p72 = scmp.eq.s32.totalorder %s25, 0
      %p73 = por %p71, %p72
      %s75 = sadd.s32 %s74, 1
      %p78 = scmp.eq.s32.totalorder %s19, 1
      %p79 = scmp.ne.s32.totalorder %s74, %s76
      %p80 = scmp.eq.s32.totalorder %s19, 0
      %p81 = por %p79, %p80
      %p82 = scmp.ne.s32.totalorder %s74, %s76
      %p83 = scmp.eq.s32.totalorder %s24, 1
      %p84 = por %p82, %p83
      %p85 = scmp.ne.s32.totalorder %s76, %s77
      %p86 = scmp.eq.s32.totalorder %s24, 0
      %p87 = por %p85, %p86
      %p88 = scmp.ne.s32.totalorder %s76, %s77
      %p89 = scmp.eq.s32.totalorder %s25, 1
      %p90 = por %p88, %p89
      %p92 = scmp.ne.s32.totalorder %s77, %s91
      %p93 = scmp.eq.s32.totalorder %s25, 0
      %p94 = por %p92, %p93
      %s96 = sadd.s32 %s95, 1
      %p99 = scmp.eq.s32.totalorder %s19, 1
      %p100 = scmp.ne.s32.totalorder %s95, %s97
      %p101 = scmp.eq.s32.totalorder %s19, 0
      %p102 = por %p100, %p101
      %p103 = scmp.ne.s32.totalorder %s95, %s97
      %p104 = scmp.eq.s32.totalorder %s24, 1
      %p105 = por %p103, %p104
      %p106 = scmp.ne.s32.totalorder %s97, %s98
      %p107 = scmp.eq.s32.totalorder %s24, 0
      %p108 = por %p106, %p107
      %p109 = scmp.ne.s32.totalorder %s97, %s98
      %p110 = scmp.eq.s32.totalorder %s25, 1
      %p111 = por %p109, %p110
      %p113 = scmp.ne.s32.totalorder %s98, %s112
      %p114 = scmp.eq.s32.totalorder %s25, 0
      %p115 = por %p113, %p114
      %s116 = ssub.s32 %s19, %s26
      %p117 = scmp.eq.s32.totalorder %s116, 0
      %s119 = sadd.s32 %s118, 1
      %s120 = scalar_select %p117, %s118, %s119
      %p123 = pneg %p117
      %p124 = scmp.eq.s32.totalorder %s19, 1
      %p125 = por %p123, %p124
      %p126 = scmp.ne.s32.totalorder %s118, %s121
      %p127 = scmp.eq.s32.totalorder %s19, 0
      %p128 = por %p126, %p127
      %p129 = scmp.ne.s32.totalorder %s118, %s121
      %p130 = scmp.eq.s32.totalorder %s24, 1
      %p131 = por %p129, %p130
      %p132 = scmp.ne.s32.totalorder %s121, %s122
      %p133 = scmp.eq.s32.totalorder %s24, 0
      %p134 = por %p132, %p133
      %p135 = scmp.ne.s32.totalorder %s121, %s122
      %p136 = scmp.eq.s32.totalorder %s25, 1
      %p137 = por %p135, %p136
      %p139 = scmp.ne.s32.totalorder %s122, %s138
      %p140 = scmp.eq.s32.totalorder %s25, 0
      %p141 = por %p139, %p140
      %p142 = scmp.le.s32.totalorder 1, %s19
      %p143 = scmp.lt.s32.totalorder %s19, 3
      %p144 = pnand %p142, %p143
      %p145 = pneg %p144
      // Predicated region
      $region9: #{tpu_custom_call.1} parent=5 // pred_check
        _
      $region10: #{tpu_custom_call.1} parent=5 // pred_check_branch
        %147 = sbr.rel (%p144) target = $region12
      $region11: #{tpu_custom_call.1} parent=5 // pred_region
        %s148 = ssub.s32 %s19, 1
        // Predicated region
        $region13: #{tpu_custom_call.1} parent=11 // pred_check
          %p149 = pneg %p66
        $region14: #{tpu_custom_call.1} parent=11 // pred_check_branch
          %151 = sbr.rel (%p149) target = $region16
        $region15: #{tpu_custom_call.1} parent=11 // pred_region
          %s153 = ssub.s32 512, 512
          %154 = vsyncadd [#allocation8], %s153
          %s155 = sshll.u32 [#allocation7], 4
          %s156 = int_to_ptr.vmem [resolvable:$true] %s155
          %161 = dma.hbm_to_vmem [thread:$0]  %s1, 512, %s156, [#allocation8], 256, 256, 16
        $region16: #{tpu_custom_call.1} parent=11 // pred_fallthru
          _
        // Predicated region
        $region17: #{tpu_custom_call.1} parent=11 // pred_check
          %p162 = pneg %p87
        $region18: #{tpu_custom_call.1} parent=11 // pred_check_branch
          %164 = sbr.rel (%p162) target = $region20
        $region19: #{tpu_custom_call.1} parent=11 // pred_region
          %s166 = ssub.s32 16, 16
          %167 = vsyncadd [#allocation6], %s166
          %s169 = sshll.u32 %s2, 4
          %s170 = int_to_ptr.vmem [resolvable:$true] %s169
          %172 = dma.vmem_to_smem %s170, 16, [#allocation9], [#allocation6]
        $region20: #{tpu_custom_call.1} parent=11 // pred_fallthru
          _
        // Predicated region
        $region21: #{tpu_custom_call.1} parent=11 // pred_check
          %p173 = pneg %p108
        $region22: #{tpu_custom_call.1} parent=11 // pred_check_branch
          %175 = sbr.rel (%p173) target = $region24
        $region23: #{tpu_custom_call.1} parent=11 // pred_region
          _
        $region24: #{tpu_custom_call.1} parent=11 // pred_fallthru
          _
      $region12: #{tpu_custom_call.1} parent=5 // pred_fallthru
        _
      %p176 = scmp.lt.s32.totalorder %s19, 2
      // Predicated region
      $region25: #{tpu_custom_call.1} parent=5 // pred_check
        %p177 = pneg %p176
      $region26: #{tpu_custom_call.1} parent=5 // pred_check_branch
        %179 = sbr.rel (%p177) target = $region28
      $region27: #{tpu_custom_call.1} parent=5 // pred_region
        // Predicated region
        $region29: #{tpu_custom_call.1} parent=27 // pred_check
          %p180 = pneg %p39
        $region30: #{tpu_custom_call.1} parent=27 // pred_check_branch
          %182 = sbr.rel (%p180) target = $region32
        $region31: #{tpu_custom_call.1} parent=27 // pred_region
          %s183 = sand.u32 %s29, 1
          %s184 = scalar_lea.sflag [#allocation4], %s183
          %s185 = sand.u32 %s29, 1
          %s186 = smul.addr %s185, 8
          %s187 = scalar_lea.vmem [#allocation3], %s186
          %s189 = ssub.s32 128, 128
          %190 = vsyncadd %s184, %s189
          %s191 = smul.addr %s19, 2
          %s192 = smul.addr %s191, 64
          %s193 = scalar_lea.hbm %s0, %s192
          %s195 = sshll.u32 %s187, 4
          %s196 = int_to_ptr.vmem [resolvable:$true] %s195
          %198 = dma.hbm_to_vmem [thread:$0]  %s193, 128, %s196, %s184
        $region32: #{tpu_custom_call.1} parent=27 // pred_fallthru
          _
      $region28: #{tpu_custom_call.1} parent=5 // pred_fallthru
        _
      %p199 = scmp.le.s32.totalorder 1, %s19
      %p200 = scmp.lt.s32.totalorder %s19, 3
      %p201 = pnand %p199, %p200
      %p202 = pneg %p201
      // Predicated region
      $region33: #{tpu_custom_call.1} parent=5 // pred_check
        _
      $region34: #{tpu_custom_call.1} parent=5 // pred_check_branch
        %204 = sbr.rel (%p201) target = $region36
      $region35: #{tpu_custom_call.1} parent=5 // pred_region
        %s205 = ssub.s32 %s19, 1
        %s206 = sand.u32 %s32, 1
        %s207 = scalar_lea.sflag [#allocation4], %s206
        %s208 = sand.u32 %s32, 1
        %s209 = smul.addr %s208, 8
        %s210 = scalar_lea.vmem [#allocation3], %s209
        // Predicated region
        $region37: #{tpu_custom_call.1} parent=35 // pred_check
          %p211 = pneg %p45
        $region38: #{tpu_custom_call.1} parent=35 // pred_check_branch
          %213 = sbr.rel (%p211) target = $region40
        $region39: #{tpu_custom_call.1} parent=35 // pred_region
          %214 = dma.done %s207, 128
        $region40: #{tpu_custom_call.1} parent=35 // pred_fallthru
          _
        // Predicated region
        $region41: #{tpu_custom_call.1} parent=35 // pred_check
          %p215 = pneg %p66
        $region42: #{tpu_custom_call.1} parent=35 // pred_check_branch
          %217 = sbr.rel (%p215) target = $region44
        $region43: #{tpu_custom_call.1} parent=35 // pred_region
          %218 = dma.done [#allocation8], 512
        $region44: #{tpu_custom_call.1} parent=35 // pred_fallthru
          _
        // Predicated region
        $region45: #{tpu_custom_call.1} parent=35 // pred_check
          %p219 = pneg %p87
        $region46: #{tpu_custom_call.1} parent=35 // pred_check_branch
          %221 = sbr.rel (%p219) target = $region48
        $region47: #{tpu_custom_call.1} parent=35 // pred_region
          %222 = dma.done [#allocation6], 16
        $region48: #{tpu_custom_call.1} parent=35 // pred_fallthru
          _
        %223 = sfence
        %s224 = sand.u32 %s32, 1
        %s225 = scalar_lea.sflag [#allocation4], %s224
        %s226 = sand.u32 %s32, 1
        %s227 = smul.addr %s226, 8
        %s228 = scalar_lea.vmem [#allocation3], %s227
        %p229 = pneg %p45
        %p230 = pneg %p42
        %p231 = pneg %p66
        %p232 = pneg %p63
        %p233 = pneg %p87
        %p234 = pneg %p84
        %p235 = pneg %p108
        %p236 = pneg %p105
        %p237 = pneg %p134
        %p238 = pneg %p131
        %s239 = sand.u32 %s121, 1
        %s240 = scalar_lea.sflag [#allocation5], %s239
        %s241 = sand.u32 %s121, 1
        %s242 = smul.addr %s241, 8
        %s243 = scalar_lea.vmem [#allocation10], %s242
        %v244 = vld [vmem:[%s210] sm:$0xff]
        %v246 = vcombine.high %v244, %v244
        %vm248 = vcmask 1043456
        %v249 = vsel %vm248, %v244, -inf
        %v250 = vrot.slane %v249, 4
        %v251 = vmax.f32 %v249, %v250
        %v252 = vrot.slane %v251, 2
        %v253 = vmax.f32 %v251, %v252
        %v254 = vrot.slane %v253, 1
        %v255 = vmax.f32 %v253, %v254
        %v256 = vsel %vm248, %v246, -inf
        %v257 = vrot.slane %v256, 4
        %v258 = vmax.f32 %v256, %v257
        %v259 = vrot.slane %v258, 2
        %v260 = vmax.f32 %v258, %v259
        %v261 = vrot.slane %v260, 1
        %v262 = vmax.f32 %v260, %v261
        %v263 = vsel %vm248, %v244, 0.0
        %v264 = vrot.slane %v263, 4
        %v265 = vadd.f32 %v263, %v264
        %v266 = vrot.slane %v265, 2
        %v267 = vadd.f32 %v265, %v266
        %v268 = vrot.slane %v267, 1
        %v269 = vadd.f32 %v267, %v268
        %v270 = vsel %vm248, %v246, 0.0
        %v271 = vrot.slane %v270, 4
        %v272 = vadd.f32 %v270, %v271
        %v273 = vrot.slane %v272, 2
        %v274 = vadd.f32 %v272, %v273
        %v275 = vrot.slane %v274, 1
        %v276 = vadd.f32 %v274, %v275
        %v277 = vmul.f32 %v269, 0.25
        %v278 = vmul.f32 %v276, 0.25
        %v279 = vld [vmem:[#allocation7] sm:$0xff]
        %v280 = vld [vmem:[#allocation7 + $0x8] sm:$0xff]
        %v281 = vld [vmem:[#allocation7 + $0x10] sm:$0x1]
        %v282 = vld [vmem:[#allocation7 + $0x18] sm:$0x1]
        %s283 = sld [smem:[#allocation9]]
        %s284 = sld [smem:[#allocation9 + $0x9]]
        %285 = vrot.lane.b32.xlu0 %v255, 17
        %v286 = vpop.permute.xlu0 %285
        %287 = vrot.lane.b32.xlu0 %v262, 17
        %v288 = vpop.permute.xlu0 %287
        %v289 = vlaneseq
        %v290 = vand.u32 %v289, 127
        %vm291 = vcmp.lt.s32.totalorder %v290, 17
        %v292 = vsel %vm291, %v286, %v288
        %v293 = vsel %vm291, %v288, %v286
        %294 = vrot.lane.b32.xlu0 %v277, 17
        %v295 = vpop.permute.xlu0 %294
        %296 = vrot.lane.b32.xlu0 %v278, 17
        %v297 = vpop.permute.xlu0 %296
        %v298 = vsel %vm291, %v295, %v297
        %v299 = vsel %vm291, %v297, %v295
        %v300 = vstv %s283
        %v301 = vmul.f32 %v293, %v300
        %v302 = vmul.f32 %v292, %v300
        %v303 = vstv %s284
        %v304 = vmul.f32 %v299, %v303
        %v305 = vmul.f32 %v298, %v303
        %v306 = vadd.f32 %v301, %v304
        %v307 = vadd.f32 %v302, %v305
        %v308 = vmul.f32 %v279, %v306
        %v309 = vmul.f32 %v280, %v307
        %v310 = vadd.f32 %v308, 0.0
        %v311 = vadd.f32 %v309, 0.0
        %s312 = sld [smem:[#allocation9 + $0x1]]
        %s313 = sld [smem:[#allocation9 + $0xa]]
        %314 = vrot.lane.b32.xlu0 %v255, 16
        %v315 = vpop.permute.xlu0 %314
        %316 = vrot.lane.b32.xlu0 %v262, 16
        %v317 = vpop.permute.xlu0 %316
        %vm318 = vcmp.lt.s32.totalorder %v290, 16
        %v319 = vsel %vm318, %v315, %v317
        %v320 = vsel %vm318, %v317, %v315
        %321 = vrot.lane.b32.xlu0 %v277, 16
        %v322 = vpop.permute.xlu0 %321
        %323 = vrot.lane.b32.xlu0 %v278, 16
        %v324 = vpop.permute.xlu0 %323
        %v325 = vsel %vm318, %v322, %v324
        %v326 = vsel %vm318, %v324, %v322
        %v327 = vstv %s312
        %v328 = vmul.f32 %v320, %v327
        %v329 = vmul.f32 %v319, %v327
        %v330 = vstv %s313
        %v331 = vmul.f32 %v326, %v330
        %v332 = vmul.f32 %v325, %v330
        %v333 = vadd.f32 %v328, %v331
        %v334 = vadd.f32 %v329, %v332
        %v337 = vrot.slane %v333, 7
        %v338 = vrot.slane %v334, 7
        %v341 = vmul.f32 %v279, %v337
        %v342 = vmul.f32 %v280, %v338
        %v345 = vrot.slane %v341, 1
        %v346 = vrot.slane %v342, 1
        %v349 = vadd.f32 %v310, %v345
        %v350 = vadd.f32 %v311, %v346
        %s351 = sld [smem:[#allocation9 + $0x2]]
        %s352 = sld [smem:[#allocation9 + $0xb]]
        %353 = vrot.lane.b32.xlu0 %v255, 15
        %v354 = vpop.permute.xlu0 %353
        %355 = vrot.lane.b32.xlu0 %v262, 15
        %v356 = vpop.permute.xlu0 %355
        %vm357 = vcmp.lt.s32.totalorder %v290, 15
        %v358 = vsel %vm357, %v354, %v356
        %v359 = vsel %vm357, %v356, %v354
        %360 = vrot.lane.b32.xlu0 %v277, 15
        %v361 = vpop.permute.xlu0 %360
        %362 = vrot.lane.b32.xlu0 %v278, 15
        %v363 = vpop.permute.xlu0 %362
        %v364 = vsel %vm357, %v361, %v363
        %v365 = vsel %vm357, %v363, %v361
        %v366 = vstv %s351
        %v367 = vmul.f32 %v359, %v366
        %v368 = vmul.f32 %v358, %v366
        %v369 = vstv %s352
        %v370 = vmul.f32 %v365, %v369
        %v371 = vmul.f32 %v364, %v369
        %v372 = vadd.f32 %v367, %v370
        %v373 = vadd.f32 %v368, %v371
        %v376 = vrot.slane %v372, 6
        %v377 = vrot.slane %v373, 6
        %v380 = vmul.f32 %v279, %v376
        %v381 = vmul.f32 %v280, %v377
        %v384 = vrot.slane %v380, 2
        %v385 = vrot.slane %v381, 2
        %v388 = vadd.f32 %v349, %v384
        %v389 = vadd.f32 %v350, %v385
        %s390 = sld [smem:[#allocation9 + $0x3]]
        %s391 = sld [smem:[#allocation9 + $0xc]]
        %392 = vrot.lane.b32.xlu0 %v255, 1
        %v393 = vpop.permute.xlu0 %392
        %394 = vrot.lane.b32.xlu0 %v262, 1
        %v395 = vpop.permute.xlu0 %394
        %vm396 = vcmp.lt.s32.totalorder %v290, 1
        %v397 = vsel %vm396, %v393, %v395
        %v398 = vsel %vm396, %v395, %v393
        %399 = vrot.lane.b32.xlu0 %v277, 1
        %v400 = vpop.permute.xlu0 %399
        %401 = vrot.lane.b32.xlu0 %v278, 1
        %v402 = vpop.permute.xlu0 %401
        %v403 = vsel %vm396, %v400, %v402
        %v404 = vsel %vm396, %v402, %v400
        %v405 = vstv %s390
        %v406 = vmul.f32 %v398, %v405
        %v407 = vmul.f32 %v397, %v405
        %v408 = vstv %s391
        %v409 = vmul.f32 %v404, %v408
        %v410 = vmul.f32 %v403, %v408
        %v411 = vadd.f32 %v406, %v409
        %v412 = vadd.f32 %v407, %v410
        %v415 = vrot.slane %v411, 5
        %v416 = vrot.slane %v412, 5
        %v419 = vmul.f32 %v279, %v415
        %v420 = vmul.f32 %v280, %v416
        %v423 = vrot.slane %v419, 3
        %v424 = vrot.slane %v420, 3
        %v427 = vadd.f32 %v388, %v423
        %v428 = vadd.f32 %v389, %v424
        %s429 = sld [smem:[#allocation9 + $0x4]]
        %s430 = sld [smem:[#allocation9 + $0xd]]
        %v431 = vstv %s429
        %v432 = vmul.f32 %v255, %v431
        %v433 = vmul.f32 %v262, %v431
        %v434 = vstv %s430
        %v435 = vmul.f32 %v277, %v434
        %v436 = vmul.f32 %v278, %v434
        %v437 = vadd.f32 %v432, %v435
        %v438 = vadd.f32 %v433, %v436
        %v439 = vmul.f32 %v279, %v437
        %v440 = vmul.f32 %v280, %v438
        %v443 = vrot.slane %v439, 4
        %v444 = vrot.slane %v440, 4
        %v447 = vadd.f32 %v427, %v443
        %v448 = vadd.f32 %v428, %v444
        %s449 = sld [smem:[#allocation9 + $0x5]]
        %s450 = sld [smem:[#allocation9 + $0xe]]
        %451 = vrot.lane.b32.xlu0 %v255, 127
        %v452 = vpop.permute.xlu0 %451
        %453 = vrot.lane.b32.xlu0 %v262, 127
        %v454 = vpop.permute.xlu0 %453
        %vm455 = vcmp.lt.s32.totalorder %v290, 127
        %v456 = vsel %vm455, %v452, %v454
        %v457 = vsel %vm455, %v454, %v452
        %458 = vrot.lane.b32.xlu0 %v277, 127
        %v459 = vpop.permute.xlu0 %458
        %460 = vrot.lane.b32.xlu0 %v278, 127
        %v461 = vpop.permute.xlu0 %460
        %v462 = vsel %vm455, %v459, %v461
        %v463 = vsel %vm455, %v461, %v459
        %v464 = vstv %s449
        %v465 = vmul.f32 %v456, %v464
        %v466 = vmul.f32 %v457, %v464
        %v467 = vstv %s450
        %v468 = vmul.f32 %v462, %v467
        %v469 = vmul.f32 %v463, %v467
        %v470 = vadd.f32 %v465, %v468
        %v471 = vadd.f32 %v466, %v469
        %v474 = vrot.slane %v470, 3
        %v475 = vrot.slane %v471, 3
        %v478 = vmul.f32 %v279, %v474
        %v479 = vmul.f32 %v280, %v475
        %v482 = vrot.slane %v478, 5
        %v483 = vrot.slane %v479, 5
        %v486 = vadd.f32 %v447, %v482
        %v487 = vadd.f32 %v448, %v483
        %s488 = sld [smem:[#allocation9 + $0x6]]
        %s489 = sld [smem:[#allocation9 + $0xf]]
        %490 = vrot.lane.b32.xlu0 %v255, 113
        %v491 = vpop.permute.xlu0 %490
        %492 = vrot.lane.b32.xlu0 %v262, 113
        %v493 = vpop.permute.xlu0 %492
        %vm494 = vcmp.lt.s32.totalorder %v290, 113
        %v495 = vsel %vm494, %v491, %v493
        %v496 = vsel %vm494, %v493, %v491
        %497 = vrot.lane.b32.xlu0 %v277, 113
        %v498 = vpop.permute.xlu0 %497
        %499 = vrot.lane.b32.xlu0 %v278, 113
        %v500 = vpop.permute.xlu0 %499
        %v501 = vsel %vm494, %v498, %v500
        %v502 = vsel %vm494, %v500, %v498
        %v503 = vstv %s488
        %v504 = vmul.f32 %v495, %v503
        %v505 = vmul.f32 %v496, %v503
        %v506 = vstv %s489
        %v507 = vmul.f32 %v501, %v506
        %v508 = vmul.f32 %v502, %v506
        %v509 = vadd.f32 %v504, %v507
        %v510 = vadd.f32 %v505, %v508
        %v513 = vrot.slane %v509, 2
        %v514 = vrot.slane %v510, 2
        %v517 = vmul.f32 %v279, %v513
        %v518 = vmul.f32 %v280, %v514
        %v521 = vrot.slane %v517, 6
        %v522 = vrot.slane %v518, 6
        %v525 = vadd.f32 %v486, %v521
        %v526 = vadd.f32 %v487, %v522
        %s527 = sld [smem:[#allocation9 + $0x7]]
        %s528 = sld [smem:[#allocation9 + $0x10]]
        %529 = vrot.lane.b32.xlu0 %v255, 112
        %v530 = vpop.permute.xlu0 %529
        %531 = vrot.lane.b32.xlu0 %v262, 112
        %v532 = vpop.permute.xlu0 %531
        %vm533 = vcmp.lt.s32.totalorder %v290, 112
        %v534 = vsel %vm533, %v530, %v532
        %v535 = vsel %vm533, %v532, %v530
        %536 = vrot.lane.b32.xlu0 %v277, 112
        %v537 = vpop.permute.xlu0 %536
        %538 = vrot.lane.b32.xlu0 %v278, 112
        %v539 = vpop.permute.xlu0 %538
        %v540 = vsel %vm533, %v537, %v539
        %v541 = vsel %vm533, %v539, %v537
        %v542 = vstv %s527
        %v543 = vmul.f32 %v534, %v542
        %v544 = vmul.f32 %v535, %v542
        %v545 = vstv %s528
        %v546 = vmul.f32 %v540, %v545
        %v547 = vmul.f32 %v541, %v545
        %v548 = vadd.f32 %v543, %v546
        %v549 = vadd.f32 %v544, %v547
        %v552 = vrot.slane %v548, 1
        %v553 = vrot.slane %v549, 1
        %v556 = vmul.f32 %v279, %v552
        %v557 = vmul.f32 %v280, %v553
        %v560 = vrot.slane %v556, 7
        %v561 = vrot.slane %v557, 7
        %v564 = vadd.f32 %v525, %v560
        %v565 = vadd.f32 %v526, %v561
        %s566 = sld [smem:[#allocation9 + $0x8]]
        %s567 = sld [smem:[#allocation9 + $0x11]]
        %568 = vrot.lane.b32.xlu0 %v255, 111
        %v569 = vpop.permute.xlu0 %568
        %570 = vrot.lane.b32.xlu0 %v262, 111
        %v571 = vpop.permute.xlu0 %570
        %vm572 = vcmp.lt.s32.totalorder %v290, 111
        %v573 = vsel %vm572, %v569, %v571
        %v574 = vsel %vm572, %v571, %v569
        %575 = vrot.lane.b32.xlu0 %v277, 111
        %v576 = vpop.permute.xlu0 %575
        %577 = vrot.lane.b32.xlu0 %v278, 111
        %v578 = vpop.permute.xlu0 %577
        %v579 = vsel %vm572, %v576, %v578
        %v580 = vsel %vm572, %v578, %v576
        %v581 = vstv %s566
        %v582 = vmul.f32 %v573, %v581
        %v583 = vmul.f32 %v574, %v581
        %v584 = vstv %s567
        %v585 = vmul.f32 %v579, %v584
        %v586 = vmul.f32 %v580, %v584
        %v587 = vadd.f32 %v582, %v585
        %v588 = vadd.f32 %v583, %v586
        %v589 = vmul.f32 %v281, %v587
        %v590 = vmul.f32 %v282, %v588
        %v591 = vadd.f32 %v564, %v589
        %v592 = vadd.f32 %v565, %v590
        %s593 = sld [smem:[#allocation2]]
        %v594 = vstv %s593
        %v595 = vadd.f32 %v591, %v594
        %v596 = vadd.f32 %v592, %v594
        %v597 = vxor.u32 %v595, 2147483648
        %v598 = vxor.u32 %v596, 2147483648
        %v599 = vmul.f32 %v597, 1.442695
        %v600 = vpow.pop %v599
        %v601 = vmul.f32 %v598, 1.442695
        %v602 = vpow.pop %v601
        %v603 = vadd.f32 %v600, 1.0
        %v604 = vadd.f32 %v602, 1.0
        %v605 = vrcp.pop %v603
        %v606 = vmul.f32 1.0, %v605
        %v607 = vrcp.pop %v604
        %v608 = vmul.f32 1.0, %v607
        %v609 = vlaneseq
        %v610 = vshrl.u32 %v609, 7
        %v611 = vsub.s32 0, %v610
        %v612 = vrot.slane %v606, %v611
        %v613 = vlaneseq
        %v614 = vshrl.u32 %v613, 7
        %v615 = vsub.s32 0, %v614
        %v616 = vrot.slane %v608, %v615
        %v619 = vcombine.low %v612, %v616
        %621 = vst [vmem:[%s243] sm:$0xff] %v619
        %s622 = sand.u32 %s121, 1
        %s623 = scalar_lea.sflag [#allocation5], %s622
        %s624 = sand.u32 %s121, 1
        %s625 = smul.addr %s624, 8
        %s626 = scalar_lea.vmem [#allocation10], %s625
        // Predicated region
        $region49: #{tpu_custom_call.1} parent=35 // pred_check
          %p627 = pneg %p131
        $region50: #{tpu_custom_call.1} parent=35 // pred_check_branch
          %629 = sbr.rel (%p627) target = $region52
        $region51: #{tpu_custom_call.1} parent=35 // pred_region
          %s631 = ssub.s32 128, 128
          %632 = vsyncadd %s623, %s631
          %s633 = smul.addr %s24, 2
          %s634 = smul.addr %s633, 64
          %s635 = scalar_lea.hbm %s4, %s634
          %s637 = sshll.u32 %s626, 4
          %s638 = int_to_ptr.vmem [resolvable:$true] %s637
          %640 = dma.vmem_to_hbm [thread:$0]  %s638, 128, %s635, %s623
        $region52: #{tpu_custom_call.1} parent=35 // pred_fallthru
          _
      $region36: #{tpu_custom_call.1} parent=5 // pred_fallthru
        _
      %p641 = scmp.le.s32.totalorder 2, %s19
      // Predicated region
      $region53: #{tpu_custom_call.1} parent=5 // pred_check
        %p642 = pneg %p641
      $region54: #{tpu_custom_call.1} parent=5 // pred_check_branch
        %644 = sbr.rel (%p642) target = $region56
      $region55: #{tpu_custom_call.1} parent=5 // pred_region
        %s645 = ssub.s32 %s19, 2
        // Predicated region
        $region57: #{tpu_custom_call.1} parent=55 // pred_check
          %p646 = pneg %p137
        $region58: #{tpu_custom_call.1} parent=55 // pred_check_branch
          %648 = sbr.rel (%p646) target = $region60
        $region59: #{tpu_custom_call.1} parent=55 // pred_region
          %s649 = sand.u32 %s122, 1
          %s650 = scalar_lea.sflag [#allocation5], %s649
          %s651 = sand.u32 %s122, 1
          %s652 = smul.addr %s651, 8
          %s653 = scalar_lea.vmem [#allocation10], %s652
          %654 = dma.done %s650, 128
        $region60: #{tpu_custom_call.1} parent=55 // pred_fallthru
          _
      $region56: #{tpu_custom_call.1} parent=5 // pred_fallthru
        _
    $region6: #{tpu_custom_call.1} parent=1 // loop_footer
      %s23 = sadd.s32 1, %s19
    $region7: #{tpu_custom_call.1} parent=1 // loop_footer_branch
      %18 = sbr.rel target = $region3
    $region8: #{tpu_custom_call.1} parent=1 // loop_exit
      _
    %655 = vsyncpa [#allocation4], 1
    %s656 = scalar_lea.sflag [#allocation4], 1
    %657 = vsyncpa %s656, 1
    %658 = vsyncpa [#allocation8], 1
    %659 = vsyncpa [#allocation5], 1
    %s660 = scalar_lea.sflag [#allocation5], 1
    %661 = vsyncpa %s660, 1
    %662 = vsyncpa [#allocation6], 1
    %s663 = scalar_lea.sflag [#allocation6], 1
    %664 = vsyncpa %s663, 1

</llo_original>
